<compile_context>
chip_gen: v6e
topology: v6e:2x2x1
jax: 0.10.0
libtpu: 0.0.40
codegen_flags: <defaults>
</compile_context>

<pallas_src>
import functools

import jax
import jax.numpy as jnp
from jax.experimental import pallas as pl
from jax.experimental.pallas import tpu as pltpu  # noqa: F401  (TPU backend)

LANE = 128
SUBLANE = 8


def _round_up(n, m):
    return ((n + m - 1) // m) * m


# ----------------------------------------------------------------------------
# Fused Pallas kernel: whole MLP forward in one call
# ----------------------------------------------------------------------------
def _fused_mlp_kernel(*refs, num_hidden, act_scale, inv_act_scale, act_qmax):
    # refs = (x, w1_t, b1, ..., wH_t, bH, w_out_t, b_out, o)
    x_ref = refs[0]
    o_ref = refs[-1]

    h = x_ref[...]                       # (B_pad, D_pad) f32, stays in vregs/VMEM
    idx = 1
    for _ in range(num_hidden):
        w_ref, b_ref = refs[idx], refs[idx + 1]
        idx += 2
        y = jnp.dot(h, w_ref[...], preferred_element_type=jnp.float32)
        y = y + b_ref[...]
        # QuantReLU(bit_width=8): relu followed by unsigned 8-bit fake-quant.
        y = jnp.maximum(y, 0.0)
        q = jnp.clip(jnp.round(y * inv_act_scale), 0.0, act_qmax)
        h = q * act_scale
        # Dropout: identity in eval mode.

    w_ref, b_ref = refs[idx], refs[idx + 1]
    y = jnp.dot(h, w_ref[...], preferred_element_type=jnp.float32) + b_ref[...]
    o_ref[...] = y.astype(o_ref.dtype)   # lane-dense (B_pad, 128) slab


def _fused_mlp_call(x_pad, flat_params, *, num_hidden, act_scale,
                    inv_act_scale, act_qmax):
    B = x_pad.shape[0]
    out_pad = flat_params[-1].shape[1]   # padded output width (multiple of 128)
    kernel = functools.partial(
        _fused_mlp_kernel,
        num_hidden=num_hidden,
        act_scale=act_scale,
        inv_act_scale=inv_act_scale,
        act_qmax=act_qmax,
    )
    # Gridless call; every operand is a single full-array block resident in VMEM.
    in_specs = [pl.BlockSpec(x_pad.shape, lambda: (0, 0))]
    in_specs += [pl.BlockSpec(p.shape, lambda: (0, 0)) for p in flat_params]
    return pl.pallas_call(
        kernel,
        out_shape=jax.ShapeDtypeStruct((B, out_pad), jnp.float32),
        in_specs=in_specs,
        out_specs=pl.BlockSpec((B, out_pad), lambda: (0, 0)),
    )(x_pad, *flat_params)


# ----------------------------------------------------------------------------
# Parameter setup / fake quantization (run ONCE, outside the hot path)
# ----------------------------------------------------------------------------
def fakequant_weight_int8_fixedpoint(w):
    """Int8WeightPerTensorFixedPoint w/ STATS scaling:
    per-tensor abs-max scale restricted to a power of two, narrow range [-127,127]."""
    max_abs = jnp.max(jnp.abs(w))
    # Guard all-zero weights: log2(0) = -inf -> NaN scale.
    safe = jnp.maximum(max_abs, jnp.finfo(jnp.float32).tiny)
    scale = 2.0 ** jnp.ceil(jnp.log2(safe / 127.0))
    wq = jnp.clip(jnp.round(w / scale), -127.0, 127.0) * scale
    return wq.astype(jnp.float32)


def prepare_quantized_params(params):
    """Fake-quantize, transpose, and lane-pad all weights/biases once.

    Returns a flat tuple (w1_t, b1, ..., wH_t, bH, w_out_t, b_out) where each
    weight is (Din_pad, Dout_pad) and each bias is (1, Dout_pad), feature dims
    zero-padded to multiples of 128 so every kernel block is lane-dense."""
    flat = []
    for w, b in params:
        dout, din = w.shape
        wq_t = fakequant_weight_int8_fixedpoint(w).T          # (Din, Dout)
        din_p, dout_p = _round_up(din, LANE), _round_up(dout, LANE)
        w_pad = jnp.zeros((din_p, dout_p), jnp.float32).at[:din, :dout].set(wq_t)
        b_pad = jnp.zeros((1, dout_p), jnp.float32).at[0, :dout].set(b)
        flat += [w_pad, b_pad]
    return tuple(flat)


def init_quantized_nn_params(key, input_dim, units=64, layers=2):
    """Deterministic synthetic parameters matching QuantizedNN's shapes."""
    params = []
    dims = [input_dim] + [units] * layers
    for i in range(layers):
        key, kw, kb = jax.random.split(key, 3)
        w = jax.random.normal(kw, (dims[i + 1], dims[i]), jnp.float32) * 0.1
        b = jax.random.normal(kb, (dims[i + 1],), jnp.float32) * 0.01
        params.append((w, b))
    key, kw, kb = jax.random.split(key, 3)
    w_out = jax.random.normal(kw, (1, units), jnp.float32) * 0.1
    b_out = jax.random.normal(kb, (1,), jnp.float32) * 0.01
    params.append((w_out, b_out))
    return params


# ----------------------------------------------------------------------------
# Forward pass (jitted; single fused pallas_call)
# ----------------------------------------------------------------------------
@functools.partial(jax.jit,
                   static_argnames=("num_hidden", "act_bit_width", "act_max_val"))
def quantized_nn_forward(x, qparams, *, num_hidden, act_bit_width=8,
                         act_max_val=6.0):
    """Forward pass of QuantizedNN (eval mode: dropout = identity)."""
    # TODO(synk): training-mode dropout (Bernoulli mask + 1/(1-p) rescale) is
    # not implemented; eval-mode dropout is identity, matching module.eval().
    act_qmax = float(2 ** act_bit_width - 1)       # 255 for 8-bit unsigned
    act_scale = act_max_val / act_qmax
    inv_act_scale = 1.0 / act_scale                # baked-in constant -> VALU mul

    B, din = x.shape
    B_pad = _round_up(B, SUBLANE)
    din_pad = qparams[0].shape[0]
    x_pad = jnp.zeros((B_pad, din_pad), jnp.float32).at[:B, :din].set(x)

    out_pad = _fused_mlp_call(
        x_pad, qparams,
        num_hidden=num_hidden,
        act_scale=act_scale,
        inv_act_scale=inv_act_scale,
        act_qmax=act_qmax,
    )
    return out_pad[:B, :1]                         # true head width is 1


# ----------------------------------------------------------------------------
# Pure-JAX reference (unpadded) for a correctness cross-check
# ----------------------------------------------------------------------------
def reference_forward(x, params, act_bit_width=8, act_max_val=6.0):
    act_qmax = float(2 ** act_bit_width - 1)
    act_scale = act_max_val / act_qmax
    h = x
    for w, b in params[:-1]:
        wq = fakequant_weight_int8_fixedpoint(w)
        y = h @ wq.T + b
        y = jnp.maximum(y, 0.0)
        h = jnp.clip(jnp.round(y / act_scale), 0.0, act_qmax) * act_scale
    w_out, b_out = params[-1]
    wq_out = fakequant_weight_int8_fixedpoint(w_out)
    return h @ wq_out.T + b_out


# ----------------------------------------------------------------------------
if __name__ == "__main__":
    key = jax.random.PRNGKey(0)
    key_x, key_p = jax.random.split(key)

    batch = 8
    input_dim = 32
    units = 64
    layers = 2

    x = jax.random.normal(key_x, (batch, input_dim), jnp.float32)
    params = init_quantized_nn_params(key_p, input_dim, units=units, layers=layers)

    # Hoisted out of the hot path: quantize / transpose / pad weights once.
    qparams = prepare_quantized_params(params)

    out = quantized_nn_forward(x, qparams, num_hidden=layers)
    out = jax.block_until_ready(out)

    assert out.shape == (batch, 1), out.shape
    assert out.dtype == jnp.float32, out.dtype
    assert bool(jnp.all(jnp.isfinite(out)))

    ref = reference_forward(x, params)
    # Loose tolerance: fake-quant rounding boundaries can flip one level under
    # tiny matmul-precision differences; that only shifts outputs by O(1e-3).
    assert jnp.allclose(out, ref, atol=5e-2), (out, ref)

    print("KERNEL_OK")
</pallas_src>

<mosaic_0001>
module attributes {stable_mosaic.version = 11 : i64} {
  func.func @_fused_mlp_kernel(%arg0: memref<8x128xf32, #tpu.memory_space<vmem>>, %arg1: memref<128x128xf32, #tpu.memory_space<vmem>>, %arg2: memref<1x128xf32, #tpu.memory_space<vmem>>, %arg3: memref<128x128xf32, #tpu.memory_space<vmem>>, %arg4: memref<1x128xf32, #tpu.memory_space<vmem>>, %arg5: memref<128x128xf32, #tpu.memory_space<vmem>>, %arg6: memref<1x128xf32, #tpu.memory_space<vmem>>, %arg7: memref<8x128xf32, #tpu.memory_space<vmem>>) attributes {dimension_semantics = [], scalar_prefetch = 0 : i64, scratch_operands = 0 : i64, tpu.core_type = #tpu.core_type<tc>} {
    %c0 = arith.constant 0 : index
    %c0_0 = arith.constant 0 : index
    %0 = vector.load %arg0[%c0, %c0_0] : memref<8x128xf32, #tpu.memory_space<vmem>>, vector<8x128xf32>
    %c0_1 = arith.constant 0 : index
    %c0_2 = arith.constant 0 : index
    %1 = vector.load %arg1[%c0_1, %c0_2] : memref<128x128xf32, #tpu.memory_space<vmem>>, vector<128x128xf32>
    %cst = arith.constant dense<0.000000e+00> : vector<8x128xf32>
    %2 = tpu.matmul %0, %1, %cst {dimension_numbers = #tpu.dot_dimension_numbers<[1], [0], [0], [1], [0, 0, 1, 1], [], []>} : vector<8x128xf32>, vector<128x128xf32>, vector<8x128xf32> -> vector<8x128xf32>
    %c0_3 = arith.constant 0 : index
    %c0_4 = arith.constant 0 : index
    %3 = vector.load %arg2[%c0_3, %c0_4] : memref<1x128xf32, #tpu.memory_space<vmem>>, vector<1x128xf32>
    %4 = vector.broadcast %3 : vector<1x128xf32> to vector<8x128xf32>
    %5 = arith.addf %2, %4 : vector<8x128xf32>
    %cst_5 = arith.constant 0.000000e+00 : f32
    %6 = vector.broadcast %cst_5 : f32 to vector<8x128xf32>
    %7 = arith.maximumf %5, %6 : vector<8x128xf32>
    %cst_6 = arith.constant 4.250000e+01 : f32
    %8 = vector.broadcast %cst_6 : f32 to vector<8x128xf32>
    %9 = arith.mulf %7, %8 : vector<8x128xf32>
    %10 = math.roundeven %9 : vector<8x128xf32>
    %cst_7 = arith.constant 0.000000e+00 : f32
    %cst_8 = arith.constant 2.550000e+02 : f32
    %11 = vector.broadcast %cst_7 : f32 to vector<8x128xf32>
    %12 = arith.maximumf %11, %10 : vector<8x128xf32>
    %13 = vector.broadcast %cst_8 : f32 to vector<8x128xf32>
    %14 = arith.minimumf %13, %12 : vector<8x128xf32>
    %cst_9 = arith.constant 0.0235294122 : f32
    %15 = vector.broadcast %cst_9 : f32 to vector<8x128xf32>
    %16 = arith.mulf %14, %15 : vector<8x128xf32>
    %c0_10 = arith.constant 0 : index
    %c0_11 = arith.constant 0 : index
    %17 = vector.load %arg3[%c0_10, %c0_11] : memref<128x128xf32, #tpu.memory_space<vmem>>, vector<128x128xf32>
    %cst_12 = arith.constant dense<0.000000e+00> : vector<8x128xf32>
    %18 = tpu.matmul %16, %17, %cst_12 {dimension_numbers = #tpu.dot_dimension_numbers<[1], [0], [0], [1], [0, 0, 1, 1], [], []>} : vector<8x128xf32>, vector<128x128xf32>, vector<8x128xf32> -> vector<8x128xf32>
    %c0_13 = arith.constant 0 : index
    %c0_14 = arith.constant 0 : index
    %19 = vector.load %arg4[%c0_13, %c0_14] : memref<1x128xf32, #tpu.memory_space<vmem>>, vector<1x128xf32>
    %20 = vector.broadcast %19 : vector<1x128xf32> to vector<8x128xf32>
    %21 = arith.addf %18, %20 : vector<8x128xf32>
    %cst_15 = arith.constant 0.000000e+00 : f32
    %22 = vector.broadcast %cst_15 : f32 to vector<8x128xf32>
    %23 = arith.maximumf %21, %22 : vector<8x128xf32>
    %cst_16 = arith.constant 4.250000e+01 : f32
    %24 = vector.broadcast %cst_16 : f32 to vector<8x128xf32>
    %25 = arith.mulf %23, %24 : vector<8x128xf32>
    %26 = math.roundeven %25 : vector<8x128xf32>
    %cst_17 = arith.constant 0.000000e+00 : f32
    %cst_18 = arith.constant 2.550000e+02 : f32
    %27 = vector.broadcast %cst_17 : f32 to vector<8x128xf32>
    %28 = arith.maximumf %27, %26 : vector<8x128xf32>
    %29 = vector.broadcast %cst_18 : f32 to vector<8x128xf32>
    %30 = arith.minimumf %29, %28 : vector<8x128xf32>
    %cst_19 = arith.constant 0.0235294122 : f32
    %31 = vector.broadcast %cst_19 : f32 to vector<8x128xf32>
    %32 = arith.mulf %30, %31 : vector<8x128xf32>
    %c0_20 = arith.constant 0 : index
    %c0_21 = arith.constant 0 : index
    %33 = vector.load %arg5[%c0_20, %c0_21] : memref<128x128xf32, #tpu.memory_space<vmem>>, vector<128x128xf32>
    %cst_22 = arith.constant dense<0.000000e+00> : vector<8x128xf32>
    %34 = tpu.matmul %32, %33, %cst_22 {dimension_numbers = #tpu.dot_dimension_numbers<[1], [0], [0], [1], [0, 0, 1, 1], [], []>} : vector<8x128xf32>, vector<128x128xf32>, vector<8x128xf32> -> vector<8x128xf32>
    %c0_23 = arith.constant 0 : index
    %c0_24 = arith.constant 0 : index
    %35 = vector.load %arg6[%c0_23, %c0_24] : memref<1x128xf32, #tpu.memory_space<vmem>>, vector<1x128xf32>
    %36 = vector.broadcast %35 : vector<1x128xf32> to vector<8x128xf32>
    %37 = arith.addf %34, %36 : vector<8x128xf32>
    %c0_25 = arith.constant 0 : index
    %c0_26 = arith.constant 0 : index
    %38 = vector.load %arg7[%c0_25, %c0_26] : memref<8x128xf32, #tpu.memory_space<vmem>>, vector<8x128xf32>
    tpu.vector_store %arg7[%c0_25, %c0_26], %37 {strides = array<i32>} : memref<8x128xf32, #tpu.memory_space<vmem>>, vector<8x128xf32>,
    return
  }
}

</mosaic_0001>

<llo_original>
// kernel: quantized_nn_forward.1
$region0: #{quantized_nn_forward.1}
  #allocation0 [shape = 'u32[]', space=smem, size = 0x4, offset = 0x4, fixed_abs, tag = 'smem constant byte address 0x4 - core index']
  #allocation1 [shape = 'u32[144,128]{1,0:T(1,128)}', space=vmem, size = 0x12000, scoped, tag = 'internal scratch']
  %s0 = inlined_call_operand.vmem [shape: f32[8,128], index: 0, kind: input, shape index: {}]
  %s1 = inlined_call_operand.hbm [shape: f32[128,128], index: 1, kind: input, shape index: {}]
  %s2 = inlined_call_operand.vmem [shape: f32[1,128], index: 2, kind: input, shape index: {}]
  %s3 = inlined_call_operand.hbm [shape: f32[128,128], index: 3, kind: input, shape index: {}]
  %s4 = inlined_call_operand.vmem [shape: f32[1,128], index: 4, kind: input, shape index: {}]
  %s5 = inlined_call_operand.hbm [shape: f32[128,128], index: 5, kind: input, shape index: {}]
  %s6 = inlined_call_operand.vmem [shape: f32[1,128], index: 6, kind: input, shape index: {}]
  %s7 = inlined_call_operand.vmem [shape: f32[8,128], index: 7, kind: output, shape index: {}]
  %s8 = sld [smem:[#allocation0]]
  $region50: #{quantized_nn_forward.1} parent=0
    _
  %s10 = ssub.s32 1, %s8
  %s11 = scalar_select 0, %s10, %s8
  $region1: #{quantized_nn_forward.1} parent=0
    #allocation2 [shape = 'u8[65536]{0}', space=vmem, size = 0x10000, scoped, tag = 'input window, operand 1, single buffered']
    #allocation3 [shape = 's32[1]{0}', space=sflag, size = 0x4, scoped, tag = 'scoped memory for quantized_nn_forward.1']
    #allocation4 [shape = 'u8[65536]{0}', space=vmem, size = 0x10000, scoped, tag = 'input window, operand 3, single buffered']
    #allocation5 [shape = 's32[1]{0}', space=sflag, size = 0x4, scoped, tag = 'scoped memory for quantized_nn_forward.1']
    #allocation6 [shape = 'u8[65536]{0}', space=vmem, size = 0x10000, scoped, tag = 'input window, operand 5, single buffered']
    %12 = vsyncpa [#allocation3], 0
    %13 = vsyncpa [#allocation5], 0
    // Predicated region
    $region2: #{quantized_nn_forward.1} parent=1 // pred_check
      _
    $region3: #{quantized_nn_forward.1} parent=1 // pred_check_branch
      %15 = sbr.rel (0) target = $region5
    $region4: #{quantized_nn_forward.1} parent=1 // pred_region
      _
    $region5: #{quantized_nn_forward.1} parent=1 // pred_fallthru
      _
    // Predicated region
    $region6: #{quantized_nn_forward.1} parent=1 // pred_check
      _
    $region7: #{quantized_nn_forward.1} parent=1 // pred_check_branch
      %17 = sbr.rel (0) target = $region9
    $region8: #{quantized_nn_forward.1} parent=1 // pred_region
      %s19 = ssub.s32 2048, 2048
      %20 = vsyncadd [#allocation3], %s19
      %s21 = sshll.u32 [#allocation2], 4
      %s22 = int_to_ptr.vmem [resolvable:$true] %s21
      %27 = dma.hbm_to_vmem [thread:$0]  %s1, 2048, %s22, [#allocation3], 128, 128, 8
    $region9: #{quantized_nn_forward.1} parent=1 // pred_fallthru
      _
    // Predicated region
    $region10: #{quantized_nn_forward.1} parent=1 // pred_check
      _
    $region11: #{quantized_nn_forward.1} parent=1 // pred_check_branch
      %29 = sbr.rel (0) target = $region13
    $region12: #{quantized_nn_forward.1} parent=1 // pred_region
      _
    $region13: #{quantized_nn_forward.1} parent=1 // pred_fallthru
      _
    // Predicated region
    $region14: #{quantized_nn_forward.1} parent=1 // pred_check
      _
    $region15: #{quantized_nn_forward.1} parent=1 // pred_check_branch
      %31 = sbr.rel (0) target = $region17
    $region16: #{quantized_nn_forward.1} parent=1 // pred_region
      %s33 = ssub.s32 2048, 2048
      %34 = vsyncadd [#allocation5], %s33
      %s35 = sshll.u32 [#allocation4], 4
      %s36 = int_to_ptr.vmem [resolvable:$true] %s35
      %41 = dma.hbm_to_vmem [thread:$0]  %s3, 2048, %s36, [#allocation5], 128, 128, 8
    $region17: #{quantized_nn_forward.1} parent=1 // pred_fallthru
      _
    // Predicated region
    $region18: #{quantized_nn_forward.1} parent=1 // pred_check
      _
    $region19: #{quantized_nn_forward.1} parent=1 // pred_check_branch
      %43 = sbr.rel (0) target = $region21
    $region20: #{quantized_nn_forward.1} parent=1 // pred_region
      _
    $region21: #{quantized_nn_forward.1} parent=1 // pred_fallthru
      _
    // Predicated region
    $region22: #{quantized_nn_forward.1} parent=1 // pred_check
      _
    $region23: #{quantized_nn_forward.1} parent=1 // pred_check_branch
      %45 = sbr.rel (0) target = $region25
    $region24: #{quantized_nn_forward.1} parent=1 // pred_region
      %s47 = ssub.s32 2048, 2048
      %48 = vsyncadd [#allocation5], %s47
      %s49 = sshll.u32 [#allocation6], 4
      %s50 = int_to_ptr.vmem [resolvable:$true] %s49
      %55 = dma.hbm_to_vmem [thread:$0]  %s5, 2048, %s50, [#allocation5], 128, 128, 8
    $region25: #{quantized_nn_forward.1} parent=1 // pred_fallthru
      _
    // Predicated region
    $region26: #{quantized_nn_forward.1} parent=1 // pred_check
      _
    $region27: #{quantized_nn_forward.1} parent=1 // pred_check_branch
      %57 = sbr.rel (0) target = $region29
    $region28: #{quantized_nn_forward.1} parent=1 // pred_region
      _
    $region29: #{quantized_nn_forward.1} parent=1 // pred_fallthru
      _
    // Predicated region
    $region30: #{quantized_nn_forward.1} parent=1 // pred_check
      _
    $region31: #{quantized_nn_forward.1} parent=1 // pred_check_branch
      %59 = sbr.rel (0) target = $region33
    $region32: #{quantized_nn_forward.1} parent=1 // pred_region
      %60 = dma.done [#allocation3], 2048
    $region33: #{quantized_nn_forward.1} parent=1 // pred_fallthru
      _
    // Predicated region
    $region34: #{quantized_nn_forward.1} parent=1 // pred_check
      _
    $region35: #{quantized_nn_forward.1} parent=1 // pred_check_branch
      %62 = sbr.rel (0) target = $region37
    $region36: #{quantized_nn_forward.1} parent=1 // pred_region
      %63 = dma.done [#allocation5], 2048
    $region37: #{quantized_nn_forward.1} parent=1 // pred_fallthru
      _
    // Predicated region
    $region38: #{quantized_nn_forward.1} parent=1 // pred_check
      _
    $region39: #{quantized_nn_forward.1} parent=1 // pred_check_branch
      %65 = sbr.rel (0) target = $region41
    $region40: #{quantized_nn_forward.1} parent=1 // pred_region
      %66 = dma.done [#allocation5], 2048
    $region41: #{quantized_nn_forward.1} parent=1 // pred_fallthru
      _
    %v67 = vld [vmem:[%s0] sm:$0xff]
    %v68 = vld [vmem:[#allocation2] sm:$0xff]
    %v69 = vld [vmem:[#allocation2 + $0x8] sm:$0xff]
    %v70 = vld [vmem:[#allocation2 + $0x10] sm:$0xff]
    %v71 = vld [vmem:[#allocation2 + $0x18] sm:$0xff]
    %v72 = vld [vmem:[#allocation2 + $0x20] sm:$0xff]
    %v73 = vld [vmem:[#allocation2 + $0x28] sm:$0xff]
    %v74 = vld [vmem:[#allocation2 + $0x30] sm:$0xff]
    %v75 = vld [vmem:[#allocation2 + $0x38] sm:$0xff]
    %v76 = vld [vmem:[#allocation2 + $0x40] sm:$0xff]
    %v77 = vld [vmem:[#allocation2 + $0x48] sm:$0xff]
    %v78 = vld [vmem:[#allocation2 + $0x50] sm:$0xff]
    %v79 = vld [vmem:[#allocation2 + $0x58] sm:$0xff]
    %v80 = vld [vmem:[#allocation2 + $0x60] sm:$0xff]
    %v81 = vld [vmem:[#allocation2 + $0x68] sm:$0xff]
    %v82 = vld [vmem:[#allocation2 + $0x70] sm:$0xff]
    %v83 = vld [vmem:[#allocation2 + $0x78] sm:$0xff]
    %v84 = vld [vmem:[%s2] sm:$0x1]
    %v86 = vlaneseq
    %v87 = vshrl.u32 %v86, 7
    %v88 = vsub.s32 0, %v87
    %v89 = vrot.slane %v84, %v88
    %91 = vmatprep.subr.mxu0 0.0
    %92 = vmatpush1.msra.mxu0 %v83
    %93 = vmatprep.subr.mxu0 0.0
    %94 = vmatpush1.msra.mxu0 %v82
    %95 = vmatprep.subr.mxu0 0.0
    %96 = vmatpush1.msra.mxu0 %v81
    %97 = vmatprep.subr.mxu0 0.0
    %98 = vmatpush1.msra.mxu0 %v80
    %99 = vmatprep.subr.mxu0 0.0
    %100 = vmatpush1.msra.mxu0 %v79
    %101 = vmatprep.subr.mxu0 0.0
    %102 = vmatpush1.msra.mxu0 %v78
    %103 = vmatprep.subr.mxu0 0.0
    %104 = vmatpush1.msra.mxu0 %v77
    %105 = vmatprep.subr.mxu0 0.0
    %106 = vmatpush1.msra.mxu0 %v76
    %107 = vmatprep.subr.mxu0 0.0
    %108 = vmatpush1.msra.mxu0 %v75
    %109 = vmatprep.subr.mxu0 0.0
    %110 = vmatpush1.msra.mxu0 %v74
    %111 = vmatprep.subr.mxu0 0.0
    %112 = vmatpush1.msra.mxu0 %v73
    %113 = vmatprep.subr.mxu0 0.0
    %114 = vmatpush1.msra.mxu0 %v72
    %115 = vmatprep.subr.mxu0 0.0
    %116 = vmatpush1.msra.mxu0 %v71
    %117 = vmatprep.subr.mxu0 0.0
    %118 = vmatpush1.msra.mxu0 %v70
    %119 = vmatprep.subr.mxu0 0.0
    %120 = vmatpush1.msra.mxu0 %v69
    %121 = vmatprep.subr.mxu0 0.0
    %122 = vmatpush1.msra.mxu0 %v68
    %123 = vmatprep.subr.mxu0 0.0
    %124 = vmatpush2.msra.mxu0 0.0
    %125 = vmatprep.subr.mxu0 0.0
    %126 = vmatpush2.msra.mxu0 0.0
    %127 = vmatprep.subr.mxu0 0.0
    %128 = vmatpush2.msra.mxu0 0.0
    %129 = vmatprep.subr.mxu0 0.0
    %130 = vmatpush2.msra.mxu0 0.0
    %131 = vmatprep.subr.mxu0 0.0
    %132 = vmatpush2.msra.mxu0 0.0
    %133 = vmatprep.subr.mxu0 0.0
    %134 = vmatpush2.msra.mxu0 0.0
    %135 = vmatprep.subr.mxu0 0.0
    %136 = vmatpush2.msra.mxu0 0.0
    %137 = vmatprep.subr.mxu0 0.0
    %138 = vmatpush2.msra.mxu0 0.0
    %139 = vmatprep.subr.mxu0 0.0
    %140 = vmatpush2.msra.mxu0 0.0
    %141 = vmatprep.subr.mxu0 0.0
    %142 = vmatpush2.msra.mxu0 0.0
    %143 = vmatprep.subr.mxu0 0.0
    %144 = vmatpush2.msra.mxu0 0.0
    %145 = vmatprep.subr.mxu0 0.0
    %146 = vmatpush2.msra.mxu0 0.0
    %147 = vmatprep.subr.mxu0 0.0
    %148 = vmatpush2.msra.mxu0 0.0
    %149 = vmatprep.subr.mxu0 0.0
    %150 = vmatpush2.msra.mxu0 0.0
    %151 = vmatprep.subr.mxu0 0.0
    %152 = vmatpush2.msra.mxu0 0.0
    %153 = vmatprep.subr.mxu0 0.0
    %154 = vmatpush2.msra.mxu0 0.0
    %155 = vmatprep.mubr.f32.mxu0 0.0
    %156 = vmatmul.mubr.f32.gmra.mxu0 %v67
    %v157 = vpop.f32.mrf.mxu0
    %v158 = vadd.f32 %v89, %v157
    %v159 = vpop.f32.mrf.mxu0
    %160 = vdwg.mxu0
    %v161 = vmax.f32 %v158, 0.0
    %v162 = vmul.f32 %v161, 42.5
    %v163 = vround.ne.pseudo %v162
    %v164 = vmax.f32 %v163, 0.0
    %v165 = vmin.f32 %v164, 255.0
    %v166 = vmul.f32 %v165, 0.023529412
    %v167 = vld [vmem:[#allocation4] sm:$0xff]
    %v168 = vld [vmem:[#allocation4 + $0x8] sm:$0xff]
    %v169 = vld [vmem:[#allocation4 + $0x10] sm:$0xff]
    %v170 = vld [vmem:[#allocation4 + $0x18] sm:$0xff]
    %v171 = vld [vmem:[#allocation4 + $0x20] sm:$0xff]
    %v172 = vld [vmem:[#allocation4 + $0x28] sm:$0xff]
    %v173 = vld [vmem:[#allocation4 + $0x30] sm:$0xff]
    %v174 = vld [vmem:[#allocation4 + $0x38] sm:$0xff]
    %v175 = vld [vmem:[#allocation4 + $0x40] sm:$0xff]
    %v176 = vld [vmem:[#allocation4 + $0x48] sm:$0xff]
    %v177 = vld [vmem:[#allocation4 + $0x50] sm:$0xff]
    %v178 = vld [vmem:[#allocation4 + $0x58] sm:$0xff]
    %v179 = vld [vmem:[#allocation4 + $0x60] sm:$0xff]
    %v180 = vld [vmem:[#allocation4 + $0x68] sm:$0xff]
    %v181 = vld [vmem:[#allocation4 + $0x70] sm:$0xff]
    %v182 = vld [vmem:[#allocation4 + $0x78] sm:$0xff]
    %v183 = vld [vmem:[%s4] sm:$0x1]
    %v185 = vlaneseq
    %v186 = vshrl.u32 %v185, 7
    %v187 = vsub.s32 0, %v186
    %v188 = vrot.slane %v183, %v187
    %190 = vmatprep.subr.mxu0 0.0
    %191 = vmatpush1.msra.mxu0 %v182
    %192 = vmatprep.subr.mxu0 0.0
    %193 = vmatpush1.msra.mxu0 %v181
    %194 = vmatprep.subr.mxu0 0.0
    %195 = vmatpush1.msra.mxu0 %v180
    %196 = vmatprep.subr.mxu0 0.0
    %197 = vmatpush1.msra.mxu0 %v179
    %198 = vmatprep.subr.mxu0 0.0
    %199 = vmatpush1.msra.mxu0 %v178
    %200 = vmatprep.subr.mxu0 0.0
    %201 = vmatpush1.msra.mxu0 %v177
    %202 = vmatprep.subr.mxu0 0.0
    %203 = vmatpush1.msra.mxu0 %v176
    %204 = vmatprep.subr.mxu0 0.0
    %205 = vmatpush1.msra.mxu0 %v175
    %206 = vmatprep.subr.mxu0 0.0
    %207 = vmatpush1.msra.mxu0 %v174
    %208 = vmatprep.subr.mxu0 0.0
    %209 = vmatpush1.msra.mxu0 %v173
    %210 = vmatprep.subr.mxu0 0.0
    %211 = vmatpush1.msra.mxu0 %v172
    %212 = vmatprep.subr.mxu0 0.0
    %213 = vmatpush1.msra.mxu0 %v171
    %214 = vmatprep.subr.mxu0 0.0
    %215 = vmatpush1.msra.mxu0 %v170
    %216 = vmatprep.subr.mxu0 0.0
    %217 = vmatpush1.msra.mxu0 %v169
    %218 = vmatprep.subr.mxu0 0.0
    %219 = vmatpush1.msra.mxu0 %v168
    %220 = vmatprep.subr.mxu0 0.0
    %221 = vmatpush1.msra.mxu0 %v167
    %222 = vmatprep.subr.mxu0 0.0
    %223 = vmatpush2.msra.mxu0 0.0
    %224 = vmatprep.subr.mxu0 0.0
    %225 = vmatpush2.msra.mxu0 0.0
    %226 = vmatprep.subr.mxu0 0.0
    %227 = vmatpush2.msra.mxu0 0.0
    %228 = vmatprep.subr.mxu0 0.0
    %229 = vmatpush2.msra.mxu0 0.0
    %230 = vmatprep.subr.mxu0 0.0
    %231 = vmatpush2.msra.mxu0 0.0
    %232 = vmatprep.subr.mxu0 0.0
    %233 = vmatpush2.msra.mxu0 0.0
    %234 = vmatprep.subr.mxu0 0.0
    %235 = vmatpush2.msra.mxu0 0.0
    %236 = vmatprep.subr.mxu0 0.0
    %237 = vmatpush2.msra.mxu0 0.0
    %238 = vmatprep.subr.mxu0 0.0
    %239 = vmatpush2.msra.mxu0 0.0
    %240 = vmatprep.subr.mxu0 0.0
    %241 = vmatpush2.msra.mxu0 0.0
    %242 = vmatprep.subr.mxu0 0.0
    %243 = vmatpush2.msra.mxu0 0.0
    %244 = vmatprep.subr.mxu0 0.0
    %245 = vmatpush2.msra.mxu0 0.0
    %246 = vmatprep.subr.mxu0 0.0
    %247 = vmatpush2.msra.mxu0 0.0
    %248 = vmatprep.subr.mxu0 0.0
    %249 = vmatpush2.msra.mxu0 0.0
    %250 = vmatprep.subr.mxu0 0.0
    %251 = vmatpush2.msra.mxu0 0.0
    %252 = vmatprep.subr.mxu0 0.0
    %253 = vmatpush2.msra.mxu0 0.0
    %254 = vmatprep.mubr.f32.mxu0 0.0
    %255 = vmatmul.mubr.f32.gmra.mxu0 %v166
    %v256 = vpop.f32.mrf.mxu0
    %v257 = vadd.f32 %v188, %v256
    %v258 = vpop.f32.mrf.mxu0
    %259 = vdwg.mxu0
    %v260 = vmax.f32 %v257, 0.0
    %v261 = vmul.f32 %v260, 42.5
    %v262 = vround.ne.pseudo %v261
    %v263 = vmax.f32 %v262, 0.0
    %v264 = vmin.f32 %v263, 255.0
    %v265 = vmul.f32 %v264, 0.023529412
    %v266 = vld [vmem:[#allocation6] sm:$0xff]
    %v267 = vld [vmem:[#allocation6 + $0x8] sm:$0xff]
    %v268 = vld [vmem:[#allocation6 + $0x10] sm:$0xff]
    %v269 = vld [vmem:[#allocation6 + $0x18] sm:$0xff]
    %v270 = vld [vmem:[#allocation6 + $0x20] sm:$0xff]
    %v271 = vld [vmem:[#allocation6 + $0x28] sm:$0xff]
    %v272 = vld [vmem:[#allocation6 + $0x30] sm:$0xff]
    %v273 = vld [vmem:[#allocation6 + $0x38] sm:$0xff]
    %v274 = vld [vmem:[#allocation6 + $0x40] sm:$0xff]
    %v275 = vld [vmem:[#allocation6 + $0x48] sm:$0xff]
    %v276 = vld [vmem:[#allocation6 + $0x50] sm:$0xff]
    %v277 = vld [vmem:[#allocation6 + $0x58] sm:$0xff]
    %v278 = vld [vmem:[#allocation6 + $0x60] sm:$0xff]
    %v279 = vld [vmem:[#allocation6 + $0x68] sm:$0xff]
    %v280 = vld [vmem:[#allocation6 + $0x70] sm:$0xff]
    %v281 = vld [vmem:[#allocation6 + $0x78] sm:$0xff]
    %v282 = vld [vmem:[%s6] sm:$0x1]
    %v284 = vlaneseq
    %v285 = vshrl.u32 %v284, 7
    %v286 = vsub.s32 0, %v285
    %v287 = vrot.slane %v282, %v286
    %289 = vmatprep.subr.mxu0 0.0
    %290 = vmatpush1.msra.mxu0 %v281
    %291 = vmatprep.subr.mxu0 0.0
    %292 = vmatpush1.msra.mxu0 %v280
    %293 = vmatprep.subr.mxu0 0.0
    %294 = vmatpush1.msra.mxu0 %v279
    %295 = vmatprep.subr.mxu0 0.0
    %296 = vmatpush1.msra.mxu0 %v278
    %297 = vmatprep.subr.mxu0 0.0
    %298 = vmatpush1.msra.mxu0 %v277
    %299 = vmatprep.subr.mxu0 0.0
    %300 = vmatpush1.msra.mxu0 %v276
    %301 = vmatprep.subr.mxu0 0.0
    %302 = vmatpush1.msra.mxu0 %v275
    %303 = vmatprep.subr.mxu0 0.0
    %304 = vmatpush1.msra.mxu0 %v274
    %305 = vmatprep.subr.mxu0 0.0
    %306 = vmatpush1.msra.mxu0 %v273
    %307 = vmatprep.subr.mxu0 0.0
    %308 = vmatpush1.msra.mxu0 %v272
    %309 = vmatprep.subr.mxu0 0.0
    %310 = vmatpush1.msra.mxu0 %v271
    %311 = vmatprep.subr.mxu0 0.0
    %312 = vmatpush1.msra.mxu0 %v270
    %313 = vmatprep.subr.mxu0 0.0
    %314 = vmatpush1.msra.mxu0 %v269
    %315 = vmatprep.subr.mxu0 0.0
    %316 = vmatpush1.msra.mxu0 %v268
    %317 = vmatprep.subr.mxu0 0.0
    %318 = vmatpush1.msra.mxu0 %v267
    %319 = vmatprep.subr.mxu0 0.0
    %320 = vmatpush1.msra.mxu0 %v266
    %321 = vmatprep.subr.mxu0 0.0
    %322 = vmatpush2.msra.mxu0 0.0
    %323 = vmatprep.subr.mxu0 0.0
    %324 = vmatpush2.msra.mxu0 0.0
    %325 = vmatprep.subr.mxu0 0.0
    %326 = vmatpush2.msra.mxu0 0.0
    %327 = vmatprep.subr.mxu0 0.0
    %328 = vmatpush2.msra.mxu0 0.0
    %329 = vmatprep.subr.mxu0 0.0
    %330 = vmatpush2.msra.mxu0 0.0
    %331 = vmatprep.subr.mxu0 0.0
    %332 = vmatpush2.msra.mxu0 0.0
    %333 = vmatprep.subr.mxu0 0.0
    %334 = vmatpush2.msra.mxu0 0.0
    %335 = vmatprep.subr.mxu0 0.0
    %336 = vmatpush2.msra.mxu0 0.0
    %337 = vmatprep.subr.mxu0 0.0
    %338 = vmatpush2.msra.mxu0 0.0
    %339 = vmatprep.subr.mxu0 0.0
    %340 = vmatpush2.msra.mxu0 0.0
    %341 = vmatprep.subr.mxu0 0.0
    %342 = vmatpush2.msra.mxu0 0.0
    %343 = vmatprep.subr.mxu0 0.0
    %344 = vmatpush2.msra.mxu0 0.0
    %345 = vmatprep.subr.mxu0 0.0
    %346 = vmatpush2.msra.mxu0 0.0
    %347 = vmatprep.subr.mxu0 0.0
    %348 = vmatpush2.msra.mxu0 0.0
    %349 = vmatprep.subr.mxu0 0.0
    %350 = vmatpush2.msra.mxu0 0.0
    %351 = vmatprep.subr.mxu0 0.0
    %352 = vmatpush2.msra.mxu0 0.0
    %353 = vmatprep.mubr.f32.mxu0 0.0
    %354 = vmatmul.mubr.f32.gmra.mxu0 %v265
    %v355 = vpop.f32.mrf.mxu0
    %v356 = vadd.f32 %v287, %v355
    %v357 = vpop.f32.mrf.mxu0
    %358 = vdwg.mxu0
    %359 = vst [vmem:[%s7] sm:$0xff] %v356
    // Predicated region
    $region42: #{quantized_nn_forward.1} parent=1 // pred_check
      _
    $region43: #{quantized_nn_forward.1} parent=1 // pred_check_branch
      %361 = sbr.rel (0) target = $region45
    $region44: #{quantized_nn_forward.1} parent=1 // pred_region
      _
    $region45: #{quantized_nn_forward.1} parent=1 // pred_fallthru
      _
    // Predicated region
    $region46: #{quantized_nn_forward.1} parent=1 // pred_check
      _
    $region47: #{quantized_nn_forward.1} parent=1 // pred_check_branch
      %363 = sbr.rel (0) target = $region49
    $region48: #{quantized_nn_forward.1} parent=1 // pred_region
      _
    $region49: #{quantized_nn_forward.1} parent=1 // pred_fallthru
      _
    %364 = vsyncpa [#allocation3], 1
    %365 = vsyncpa [#allocation5], 1

</llo_original>
